<compile_context>
chip_gen: v7x
topology: tpu7x:2x2x1
jax: 0.10.0
libtpu: 0.0.40
codegen_flags: <defaults>
</compile_context>

<pallas_src>
import jax
import jax.numpy as jnp
from jax.experimental import pallas as pl
from jax.experimental.pallas import tpu as pltpu


def _stable_softmax_kernel(x_ref, o_ref):
    # Full reduction axis (S) is resident in this block; only H is tiled.
    x = x_ref[...].astype(jnp.float32)
    x_max = jnp.max(x, axis=0, keepdims=True)          # torch.max(x, dim=0, keepdim=True)
    x_exp = jnp.exp(x - x_max)                          # exp(x - x_max): args <= 0, no overflow
    partition = jnp.sum(x_exp, axis=0, keepdims=True)   # x_exp.sum(0, keepdim=True), >= 1 in f32
    inv = pl.reciprocal(partition, approx=True)         # EUP vrcp: frees the VALU divide sequence
    o_ref[...] = (x_exp * inv).astype(o_ref.dtype)      # x_exp / partition


def _choose_lane_tile(S, H, itemsize, budget_bytes=8 * 1024 * 1024):
    """Largest lane-dense (multiple of 128) tile width dividing H within budget."""
    if H % 128 != 0:
        # Lane dim not 128-aligned: fall back to a full-extent block along H.
        # TODO(synk): for very large non-128-aligned H this single block can
        # exceed VMEM; pad H to a multiple of 128 on the wrapper side if needed.
        return H
    # Per lane-column bytes of one tile: double-buffered input + output blocks
    # (2 buffers each) in the I/O dtype, plus ~2x f32 in-kernel temporaries.
    per_col = S * (4 * itemsize + 2 * 4)
    th = max(128, (budget_bytes // max(per_col, 1)) // 128 * 128)
    th = min(th, H)
    while H % th != 0:  # H % 128 == 0, so this terminates at th == 128 at worst
        th -= 128
    return th


def _stable_softmax_2d(x, tile_h=None):
    S, H = x.shape
    th = tile_h if tile_h is not None else _choose_lane_tile(S, H, x.dtype.itemsize)
    assert th == H or (th % 128 == 0 and H % th == 0), (S, H, th)
    grid = (H // th,)

    return pl.pallas_call(
        _stable_softmax_kernel,
        out_shape=jax.ShapeDtypeStruct((S, H), x.dtype),
        grid_spec=pl.GridSpec(
            grid=grid,
            # Reduction axis (S) full-extent; lane axis (H) tiled by block index j.
            in_specs=[pl.BlockSpec((S, th), lambda j: (0, j))],
            out_specs=pl.BlockSpec((S, th), lambda j: (0, j)),
        ),
        compiler_params=pltpu.CompilerParams(
            # Columns are independent -> parallel axis (2 TCs on v7x; neutral v5e/v6e).
            dimension_semantics=("parallel",),
        ),
    )(x)


def stable_softmax(x, *, tile_h=None):
    """Softmax along axis 0 with max-stabilization, as a Pallas TPU kernel.

    x: array with at least 2 dims; reduction is over axis 0. Returns an array
    of the same shape/dtype. `tile_h` optionally forces the lane-tile width
    for the 2-D kernel (must divide the flattened trailing extent and be a
    multiple of 128 unless equal to it) — mainly for testing the tiled path.
    """
    orig_shape = x.shape
    if x.ndim == 1:
        x2 = x.reshape(orig_shape[0], 1)
    elif x.ndim == 2:
        x2 = x
    else:
        # dim-0 softmax is invariant to flattening all trailing dims.
        x2 = x.reshape(orig_shape[0], -1)
    out = _stable_softmax_2d(x2, tile_h)
    return out.reshape(orig_shape)


if __name__ == "__main__":
    key = jax.random.PRNGKey(0)
    k_small, k_tiled = jax.random.split(key)

    # Shape consistent with the module's forward: seq=8, hidden=32.
    x_small = jax.random.normal(k_small, (8, 32), dtype=jnp.float32)
    out_small = jax.block_until_ready(stable_softmax(x_small))
    ref_small = jax.nn.softmax(x_small, axis=0)
    assert out_small.shape == x_small.shape and out_small.dtype == x_small.dtype
    assert jnp.allclose(out_small, ref_small, atol=2e-3, rtol=2e-3)

    # Also exercise the lane-dense tiled path (H multiple of 128, grid > 1).
    x_tiled = jax.random.normal(k_tiled, (64, 512), dtype=jnp.float32)
    out_tiled = jax.block_until_ready(stable_softmax(x_tiled, tile_h=128))
    ref_tiled = jax.nn.softmax(x_tiled, axis=0)
    assert jnp.allclose(out_tiled, ref_tiled, atol=2e-3, rtol=2e-3)

    print("KERNEL_OK")
</pallas_src>

<mosaic_0001>
module attributes {stable_mosaic.version = 11 : i64} {
  func.func @_stable_softmax_kernel(%arg0: i32, %arg1: memref<8x32xf32, #tpu.memory_space<vmem>>, %arg2: memref<8x32xf32, #tpu.memory_space<vmem>>) attributes {dimension_semantics = [#tpu.dimension_semantics<parallel>], iteration_bounds = array<i64: 1>, scalar_prefetch = 0 : i64, scratch_operands = 0 : i64, tpu.core_type = #tpu.core_type<tc>, window_params = [{transform_indices = @transform_0, window_bounds = array<i64: 8, 32>}, {transform_indices = @transform_1, window_bounds = array<i64: 8, 32>}]} {
    %c0 = arith.constant 0 : index
    %c0_0 = arith.constant 0 : index
    %0 = vector.load %arg1[%c0, %c0_0] : memref<8x32xf32, #tpu.memory_space<vmem>>, vector<8x32xf32>
    %cst = arith.constant dense<0xFF800000> : vector<32xf32>
    %1 = vector.multi_reduction <maximumf>, %0, %cst [0] : vector<8x32xf32> to vector<32xf32>
    %2 = vector.shape_cast %1 : vector<32xf32> to vector<1x32xf32>
    %3 = vector.broadcast %2 : vector<1x32xf32> to vector<8x32xf32>
    %4 = arith.subf %0, %3 : vector<8x32xf32>
    %5 = math.exp %4 : vector<8x32xf32>
    %cst_1 = arith.constant dense<0.000000e+00> : vector<32xf32>
    %6 = vector.multi_reduction <add>, %5, %cst_1 [0] : vector<8x32xf32> to vector<32xf32>
    %7 = vector.shape_cast %6 : vector<32xf32> to vector<1x32xf32>
    %8 = tpu.reciprocal %7 {approx = true} : vector<1x32xf32> -> vector<1x32xf32>
    %9 = vector.broadcast %8 : vector<1x32xf32> to vector<8x32xf32>
    %10 = arith.mulf %5, %9 : vector<8x32xf32>
    %c0_2 = arith.constant 0 : index
    %c0_3 = arith.constant 0 : index
    %11 = vector.load %arg2[%c0_2, %c0_3] : memref<8x32xf32, #tpu.memory_space<vmem>>, vector<8x32xf32>
    tpu.vector_store %arg2[%c0_2, %c0_3], %10 {strides = array<i32>} : memref<8x32xf32, #tpu.memory_space<vmem>>, vector<8x32xf32>,
    return
  }
  func.func @transform_0(%arg0: i32) -> (i32, i32) {
    %c0_i32 = arith.constant 0 : i32
    %c0_i32_0 = arith.constant 0 : i32
    return %c0_i32, %arg0 : i32, i32
  }
  func.func @transform_1(%arg0: i32) -> (i32, i32) {
    %c0_i32 = arith.constant 0 : i32
    %c0_i32_0 = arith.constant 0 : i32
    return %c0_i32, %arg0 : i32, i32
  }
}

</mosaic_0001>

<llo_original>
// kernel: tpu_custom_call.1
$region0: #{tpu_custom_call.1}
  #allocation0 [shape = 'u32[]', space=smem, size = 0x4, offset = 0x4, fixed_abs, tag = 'smem constant byte address 0x4 - core index']
  #allocation1 [shape = 'u32[144,128]{1,0:T(1,128)}', space=vmem, size = 0x12000, scoped, tag = 'internal scratch']
  %s0 = inlined_call_operand.hbm [shape: f32[8,32], index: 0, kind: input, shape index: {}]
  %s1 = inlined_call_operand.hbm [shape: f32[8,32], index: 1, kind: output, shape index: {}]
  %s2 = sld [smem:[#allocation0]]
  $region18: #{tpu_custom_call.1} parent=0
    _
  %s4 = ssub.s32 1, %s2
  %s5 = scalar_select 0, %s4, %s2
  $region1: #{tpu_custom_call.1} parent=0
    #allocation2 [shape = 'u8[4096]{0}', space=vmem, size = 0x1000, scoped, tag = 'input window, operand 0, single buffered']
    #allocation3 [shape = 's32[1]{0}', space=sflag, size = 0x4, scoped, tag = 'scoped memory for tpu_custom_call.1']
    #allocation4 [shape = 's32[1]{0}', space=sflag, size = 0x4, scoped, tag = 'scoped memory for tpu_custom_call.1']
    #allocation5 [shape = 'u8[4096]{0}', space=vmem, size = 0x1000, scoped, tag = 'output window, operand 0, single buffered']
    %6 = vsyncpa [#allocation3], 0
    %7 = vsyncpa [#allocation4], 0
    // Predicated region
    $region2: #{tpu_custom_call.1} parent=1 // pred_check
      _
    $region3: #{tpu_custom_call.1} parent=1 // pred_check_branch
      %9 = sbr.rel (0) target = $region5
    $region4: #{tpu_custom_call.1} parent=1 // pred_region
      %s11 = ssub.s32 128, 128
      %12 = vsyncadd [#allocation3], %s11
      %s14 = sshll.u32 [#allocation2], 4
      %s15 = int_to_ptr.vmem [resolvable:$true] %s14
      %17 = dma.hbm_to_vmem [thread:$0]  %s0, 128, %s15, [#allocation3]
    $region5: #{tpu_custom_call.1} parent=1 // pred_fallthru
      _
    // Predicated region
    $region6: #{tpu_custom_call.1} parent=1 // pred_check
      _
    $region7: #{tpu_custom_call.1} parent=1 // pred_check_branch
      %19 = sbr.rel (0) target = $region9
    $region8: #{tpu_custom_call.1} parent=1 // pred_region
      %20 = dma.done [#allocation3], 128
    $region9: #{tpu_custom_call.1} parent=1 // pred_fallthru
      _
    %v21 = vld [vmem:[#allocation2] sm:$0xff]
    %vm22 = vcmask 261120
    %v23 = vsel %vm22, %v21, -inf
    %v24 = vrot.slane %v23, 4
    %v25 = vmax.f32 %v23, %v24
    %v26 = vrot.slane %v25, 2
    %v27 = vmax.f32 %v25, %v26
    %v28 = vrot.slane %v27, 1
    %v29 = vmax.f32 %v27, %v28
    %v30 = vsub.f32 %v21, %v29
    %v31 = vmul.f32 %v30, 1.442695
    %v32 = vpow.pop %v31
    %v33 = vsel %vm22, %v32, 0.0
    %v34 = vrot.slane %v33, 4
    %v35 = vadd.f32 %v33, %v34
    %v36 = vrot.slane %v35, 2
    %v37 = vadd.f32 %v35, %v36
    %v38 = vrot.slane %v37, 1
    %v39 = vadd.f32 %v37, %v38
    %v40 = vrcp.pop %v39
    %v41 = vmul.f32 %v32, %v40
    %42 = vst.msk [vmem:[#allocation5] sm:$0xff] %vm22, %v41
    // Predicated region
    $region10: #{tpu_custom_call.1} parent=1 // pred_check
      _
    $region11: #{tpu_custom_call.1} parent=1 // pred_check_branch
      %44 = sbr.rel (0) target = $region13
    $region12: #{tpu_custom_call.1} parent=1 // pred_region
      %s46 = ssub.s32 128, 128
      %47 = vsyncadd [#allocation4], %s46
      %s49 = sshll.u32 [#allocation5], 4
      %s50 = int_to_ptr.vmem [resolvable:$true] %s49
      %52 = dma.vmem_to_hbm [thread:$0]  %s50, 128, %s1, [#allocation4]
    $region13: #{tpu_custom_call.1} parent=1 // pred_fallthru
      _
    // Predicated region
    $region14: #{tpu_custom_call.1} parent=1 // pred_check
      _
    $region15: #{tpu_custom_call.1} parent=1 // pred_check_branch
      %54 = sbr.rel (0) target = $region17
    $region16: #{tpu_custom_call.1} parent=1 // pred_region
      %55 = dma.done [#allocation4], 128
    $region17: #{tpu_custom_call.1} parent=1 // pred_fallthru
      _
    %56 = vsyncpa [#allocation3], 1
    %57 = vsyncpa [#allocation4], 1

</llo_original>
